<compile_context>
chip_gen: v5e
topology: v5e:2x2
jax: 0.10.0
libtpu: 0.0.40
codegen_flags: <defaults>
</compile_context>

<pallas_src>
import functools

import jax
import jax.numpy as jnp
from jax.experimental import pallas as pl
from jax.experimental.pallas import tpu as pltpu


H1, H2, HP, HOUT = 256, 128, 64, 128   # fc widths; HOUT = fused head width (lane-dense)


# ---------------------------------------------------------------------------
# Fused MLP kernel
# ---------------------------------------------------------------------------

def _bpw_mlp_kernel(x_ref,
                    w1_ref, b1_ref, w2_ref, b2_ref,
                    w3_ref, b3_ref, w4_ref, b4_ref,
                    wh_ref, bh_ref,
                    out_ref):
    # x: (TM, D) f32; weights bf16 (in, out); biases f32 (1, N).
    x = x_ref[...].astype(jnp.bfloat16)

    h = jnp.dot(x, w1_ref[...], preferred_element_type=jnp.float32) + b1_ref[...]
    h = jnp.maximum(h, 0.1 * h)
    h = jnp.dot(h.astype(jnp.bfloat16), w2_ref[...],
                preferred_element_type=jnp.float32) + b2_ref[...]
    h = jnp.maximum(h, 0.1 * h)
    h = jnp.dot(h.astype(jnp.bfloat16), w3_ref[...],
                preferred_element_type=jnp.float32) + b3_ref[...]
    h = jnp.maximum(h, 0.1 * h)
    h = jnp.dot(h.astype(jnp.bfloat16), w4_ref[...],
                preferred_element_type=jnp.float32) + b4_ref[...]
    h = jnp.maximum(h, 0.1 * h)                                   # (TM, 128) f32

    # Fused heads: cols [0,64) policy, col 64 value, cols [65,128) zero pad.
    p = jnp.dot(h.astype(jnp.bfloat16), wh_ref[...],
                preferred_element_type=jnp.float32) + bh_ref[...]  # (TM, 128) f32

    # Per-column LeakyReLU slope: 0.1 for policy cols, 1.0 (identity) for value/pad.
    col = jax.lax.broadcasted_iota(jnp.int32, (1, HOUT), 1)
    slope = jnp.where(col < HP, jnp.float32(0.1), jnp.float32(1.0))
    out_ref[...] = jnp.maximum(p, slope * p).astype(out_ref.dtype)  # lane-dense store


# ---------------------------------------------------------------------------
# Wrapper
# ---------------------------------------------------------------------------

def _round_up(x, m):
    return ((x + m - 1) // m) * m


def _batch_tiling(batch):
    """Pick (TILE_M, B_pad): multiples of 8, <= 512 rows per tile, minimal padding,
    and >= 2 grid steps whenever the batch allows (v7x megacore sharding)."""
    cap = 512
    b8 = _round_up(batch, 8)
    if b8 <= 8:
        return 8, 8
    n_tiles = max(2, pl.cdiv(b8, cap))
    tile = _round_up(pl.cdiv(b8, n_tiles), 8)
    b_pad = _round_up(b8, tile)
    return tile, b_pad


def prepare_params(params):
    """One-time conversion of raw f32 params into kernel-ready layout/dtypes.
    Do this ONCE (outside the per-step call path)."""
    # Fused head weight/bias: [ policy (64) | value (1) | zeros (63) ].
    wh = jnp.zeros((H2, HOUT), jnp.float32)
    wh = wh.at[:, :HP].set(params["wp"])
    wh = wh.at[:, HP].set(params["wv"].reshape(H2))
    bh = jnp.zeros((HOUT,), jnp.float32)
    bh = bh.at[:HP].set(params["bp"])
    bh = bh.at[HP].set(params["bv"].reshape(())[()])

    return {
        "w1": params["w1"].astype(jnp.bfloat16),
        "b1": params["b1"].reshape(1, H1).astype(jnp.float32),
        "w2": params["w2"].astype(jnp.bfloat16),
        "b2": params["b2"].reshape(1, H1).astype(jnp.float32),
        "w3": params["w3"].astype(jnp.bfloat16),
        "b3": params["b3"].reshape(1, H2).astype(jnp.float32),
        "w4": params["w4"].astype(jnp.bfloat16),
        "b4": params["b4"].reshape(1, H2).astype(jnp.float32),
        "wh": wh.astype(jnp.bfloat16),
        "bh": bh.reshape(1, HOUT).astype(jnp.float32),
    }


@jax.jit
def bpw_mlp_forward(kparams, inputs, states, masks):
    """inputs: (B, num_inputs); states/masks pass through (no recurrence in this policy).

    Returns (value (B,1), policy_x (B,64), states), matching BPW_MLPPolicy.forward."""
    del masks  # unused by the PyTorch forward (no GRU in this policy)

    x = inputs.astype(jnp.float32)
    B, D = x.shape
    TILE_M, B_pad = _batch_tiling(B)
    if B_pad != B:
        x = jnp.pad(x, ((0, B_pad - B), (0, 0)))
    grid = (B_pad // TILE_M,)

    # Weights/biases are VMEM-resident across the whole grid (index_map -> (0, 0)).
    def resident(shape):
        return pl.BlockSpec(shape, lambda i: (0, 0))

    out = pl.pallas_call(
        _bpw_mlp_kernel,
        out_shape=jax.ShapeDtypeStruct((B_pad, HOUT), jnp.float32),
        grid=grid,
        in_specs=[
            pl.BlockSpec((TILE_M, D), lambda i: (i, 0)),
            resident((D, H1)), resident((1, H1)),
            resident((H1, H1)), resident((1, H1)),
            resident((H1, H2)), resident((1, H2)),
            resident((H2, H2)), resident((1, H2)),
            resident((H2, HOUT)), resident((1, HOUT)),
        ],
        out_specs=pl.BlockSpec((TILE_M, HOUT), lambda i: (i, 0)),
        compiler_params=pltpu.CompilerParams(
            dimension_semantics=("parallel",)),
    )(x,
      kparams["w1"], kparams["b1"], kparams["w2"], kparams["b2"],
      kparams["w3"], kparams["b3"], kparams["w4"], kparams["b4"],
      kparams["wh"], kparams["bh"])

    out = out[:B]
    policy = out[:, :HP]
    value = out[:, HP:HP + 1]
    return value, policy, states


# ---------------------------------------------------------------------------
# Params (mimics weights_init_mlp: normal(0,1) row-normalized, zero bias)
# ---------------------------------------------------------------------------

def init_params(key, num_inputs):
    ks = jax.random.split(key, 6)

    def lin(k, fan_in, fan_out):
        # Stored transposed (in, out) so y = x @ w + b.  Normalize over fan_in
        # (axis=0 of the transposed matrix), matching weights_init_mlp.
        w = jax.random.normal(k, (fan_in, fan_out), jnp.float32)
        return w / jnp.sqrt(jnp.sum(w * w, axis=0, keepdims=True))

    return {
        "w1": lin(ks[0], num_inputs, H1), "b1": jnp.zeros((H1,), jnp.float32),
        "w2": lin(ks[1], H1, H1),         "b2": jnp.zeros((H1,), jnp.float32),
        "w3": lin(ks[2], H1, H2),         "b3": jnp.zeros((H2,), jnp.float32),
        "w4": lin(ks[3], H2, H2),         "b4": jnp.zeros((H2,), jnp.float32),
        "wv": lin(ks[4], H2, 1).reshape(H2), "bv": jnp.zeros((1,), jnp.float32),
        "wp": lin(ks[5], H2, HP),         "bp": jnp.zeros((HP,), jnp.float32),
    }


def ref_forward(params, x):
    """Pure-JAX f32 reference of BPW_MLPPolicy.forward (for tolerance check)."""
    def lrelu(v):
        return jnp.where(v > 0.0, v, 0.1 * v)
    h = lrelu(x @ params["w1"] + params["b1"])
    h = lrelu(h @ params["w2"] + params["b2"])
    h = lrelu(h @ params["w3"] + params["b3"])
    h = lrelu(h @ params["w4"] + params["b4"])
    value = h @ params["wv"].reshape(H2, 1) + params["bv"]
    policy = lrelu(h @ params["wp"] + params["bp"])
    return value, policy


# ---------------------------------------------------------------------------

if __name__ == "__main__":
    key = jax.random.PRNGKey(0)
    k_in, k_st, k_p = jax.random.split(key, 3)

    B, NUM_INPUTS = 2, 24          # e.g. BipedalWalker observation dim
    inputs = jax.random.normal(k_in, (B, NUM_INPUTS), jnp.float32)
    states = jnp.zeros((B, 1), jnp.float32)   # state_size == 1, pass-through
    masks = jnp.ones((B, 1), jnp.float32)

    params = init_params(k_p, NUM_INPUTS)
    kparams = jax.block_until_ready(prepare_params(params))   # hoisted one-time prep

    value, policy_x, new_states = bpw_mlp_forward(kparams, inputs, states, masks)
    jax.block_until_ready((value, policy_x, new_states))

    assert value.shape == (B, 1)
    assert policy_x.shape == (B, HP)
    assert new_states.shape == states.shape
    assert jnp.all(jnp.isfinite(value)) and jnp.all(jnp.isfinite(policy_x))

    # Compare against pure-JAX f32 reference (kernel uses bf16 MXU inputs).
    ref_value, ref_policy = ref_forward(params, inputs)
    assert jnp.allclose(value, ref_value, rtol=3e-2, atol=3e-2)
    assert jnp.allclose(policy_x, ref_policy, rtol=3e-2, atol=3e-2)
    assert jnp.array_equal(new_states, states)

    print("KERNEL_OK")
</pallas_src>

<mosaic_0001>
module attributes {stable_mosaic.version = 11 : i64} {
  func.func @_bpw_mlp_kernel(%arg0: i32, %arg1: memref<8x24xf32, #tpu.memory_space<vmem>>, %arg2: memref<24x256xbf16, #tpu.memory_space<vmem>>, %arg3: memref<1x256xf32, #tpu.memory_space<vmem>>, %arg4: memref<256x256xbf16, #tpu.memory_space<vmem>>, %arg5: memref<1x256xf32, #tpu.memory_space<vmem>>, %arg6: memref<256x128xbf16, #tpu.memory_space<vmem>>, %arg7: memref<1x128xf32, #tpu.memory_space<vmem>>, %arg8: memref<128x128xbf16, #tpu.memory_space<vmem>>, %arg9: memref<1x128xf32, #tpu.memory_space<vmem>>, %arg10: memref<128x128xbf16, #tpu.memory_space<vmem>>, %arg11: memref<1x128xf32, #tpu.memory_space<vmem>>, %arg12: memref<8x128xf32, #tpu.memory_space<vmem>>) attributes {dimension_semantics = [#tpu.dimension_semantics<parallel>], iteration_bounds = array<i64: 1>, scalar_prefetch = 0 : i64, scratch_operands = 0 : i64, tpu.core_type = #tpu.core_type<tc>, window_params = [{transform_indices = @transform_0, window_bounds = array<i64: 8, 24>}, {pipeline_mode = #tpu.pipeline_mode<synchronous>, transform_indices = @transform_1, window_bounds = array<i64: 24, 256>}, {pipeline_mode = #tpu.pipeline_mode<synchronous>, transform_indices = @transform_2, window_bounds = array<i64: 1, 256>}, {pipeline_mode = #tpu.pipeline_mode<synchronous>, transform_indices = @transform_3, window_bounds = array<i64: 256, 256>}, {pipeline_mode = #tpu.pipeline_mode<synchronous>, transform_indices = @transform_4, window_bounds = array<i64: 1, 256>}, {pipeline_mode = #tpu.pipeline_mode<synchronous>, transform_indices = @transform_5, window_bounds = array<i64: 256, 128>}, {pipeline_mode = #tpu.pipeline_mode<synchronous>, transform_indices = @transform_6, window_bounds = array<i64: 1, 128>}, {pipeline_mode = #tpu.pipeline_mode<synchronous>, transform_indices = @transform_7, window_bounds = array<i64: 128, 128>}, {pipeline_mode = #tpu.pipeline_mode<synchronous>, transform_indices = @transform_8, window_bounds = array<i64: 1, 128>}, {pipeline_mode = #tpu.pipeline_mode<synchronous>, transform_indices = @transform_9, window_bounds = array<i64: 128, 128>}, {pipeline_mode = #tpu.pipeline_mode<synchronous>, transform_indices = @transform_10, window_bounds = array<i64: 1, 128>}, {transform_indices = @transform_11, window_bounds = array<i64: 8, 128>}]} {
    %c0 = arith.constant 0 : index
    %c0_0 = arith.constant 0 : index
    %0 = vector.load %arg1[%c0, %c0_0] : memref<8x24xf32, #tpu.memory_space<vmem>>, vector<8x24xf32>
    %1 = arith.truncf %0 : vector<8x24xf32> to vector<8x24xbf16>
    %c0_1 = arith.constant 0 : index
    %c0_2 = arith.constant 0 : index
    %2 = vector.load %arg2[%c0_1, %c0_2] : memref<24x256xbf16, #tpu.memory_space<vmem>>, vector<24x256xbf16>
    %cst = arith.constant dense<0.000000e+00> : vector<8x256xf32>
    %3 = tpu.matmul %1, %2, %cst {dimension_numbers = #tpu.dot_dimension_numbers<[1], [0], [0], [1], [0, 0, 1, 1], [], []>} : vector<8x24xbf16>, vector<24x256xbf16>, vector<8x256xf32> -> vector<8x256xf32>
    %c0_3 = arith.constant 0 : index
    %c0_4 = arith.constant 0 : index
    %4 = vector.load %arg3[%c0_3, %c0_4] : memref<1x256xf32, #tpu.memory_space<vmem>>, vector<1x256xf32>
    %5 = vector.broadcast %4 : vector<1x256xf32> to vector<8x256xf32>
    %6 = arith.addf %3, %5 : vector<8x256xf32>
    %cst_5 = arith.constant 1.000000e-01 : f32
    %7 = vector.broadcast %cst_5 : f32 to vector<8x256xf32>
    %8 = arith.mulf %7, %6 : vector<8x256xf32>
    %9 = arith.maximumf %6, %8 : vector<8x256xf32>
    %10 = arith.truncf %9 : vector<8x256xf32> to vector<8x256xbf16>
    %c0_6 = arith.constant 0 : index
    %c0_7 = arith.constant 0 : index
    %11 = vector.load %arg4[%c0_6, %c0_7] : memref<256x256xbf16, #tpu.memory_space<vmem>>, vector<256x256xbf16>
    %cst_8 = arith.constant dense<0.000000e+00> : vector<8x256xf32>
    %12 = tpu.matmul %10, %11, %cst_8 {dimension_numbers = #tpu.dot_dimension_numbers<[1], [0], [0], [1], [0, 0, 1, 1], [], []>} : vector<8x256xbf16>, vector<256x256xbf16>, vector<8x256xf32> -> vector<8x256xf32>
    %c0_9 = arith.constant 0 : index
    %c0_10 = arith.constant 0 : index
    %13 = vector.load %arg5[%c0_9, %c0_10] : memref<1x256xf32, #tpu.memory_space<vmem>>, vector<1x256xf32>
    %14 = vector.broadcast %13 : vector<1x256xf32> to vector<8x256xf32>
    %15 = arith.addf %12, %14 : vector<8x256xf32>
    %cst_11 = arith.constant 1.000000e-01 : f32
    %16 = vector.broadcast %cst_11 : f32 to vector<8x256xf32>
    %17 = arith.mulf %16, %15 : vector<8x256xf32>
    %18 = arith.maximumf %15, %17 : vector<8x256xf32>
    %19 = arith.truncf %18 : vector<8x256xf32> to vector<8x256xbf16>
    %c0_12 = arith.constant 0 : index
    %c0_13 = arith.constant 0 : index
    %20 = vector.load %arg6[%c0_12, %c0_13] : memref<256x128xbf16, #tpu.memory_space<vmem>>, vector<256x128xbf16>
    %cst_14 = arith.constant dense<0.000000e+00> : vector<8x128xf32>
    %21 = tpu.matmul %19, %20, %cst_14 {dimension_numbers = #tpu.dot_dimension_numbers<[1], [0], [0], [1], [0, 0, 1, 1], [], []>} : vector<8x256xbf16>, vector<256x128xbf16>, vector<8x128xf32> -> vector<8x128xf32>
    %c0_15 = arith.constant 0 : index
    %c0_16 = arith.constant 0 : index
    %22 = vector.load %arg7[%c0_15, %c0_16] : memref<1x128xf32, #tpu.memory_space<vmem>>, vector<1x128xf32>
    %23 = vector.broadcast %22 : vector<1x128xf32> to vector<8x128xf32>
    %24 = arith.addf %21, %23 : vector<8x128xf32>
    %cst_17 = arith.constant 1.000000e-01 : f32
    %25 = vector.broadcast %cst_17 : f32 to vector<8x128xf32>
    %26 = arith.mulf %25, %24 : vector<8x128xf32>
    %27 = arith.maximumf %24, %26 : vector<8x128xf32>
    %28 = arith.truncf %27 : vector<8x128xf32> to vector<8x128xbf16>
    %c0_18 = arith.constant 0 : index
    %c0_19 = arith.constant 0 : index
    %29 = vector.load %arg8[%c0_18, %c0_19] : memref<128x128xbf16, #tpu.memory_space<vmem>>, vector<128x128xbf16>
    %cst_20 = arith.constant dense<0.000000e+00> : vector<8x128xf32>
    %30 = tpu.matmul %28, %29, %cst_20 {dimension_numbers = #tpu.dot_dimension_numbers<[1], [0], [0], [1], [0, 0, 1, 1], [], []>} : vector<8x128xbf16>, vector<128x128xbf16>, vector<8x128xf32> -> vector<8x128xf32>
    %c0_21 = arith.constant 0 : index
    %c0_22 = arith.constant 0 : index
    %31 = vector.load %arg9[%c0_21, %c0_22] : memref<1x128xf32, #tpu.memory_space<vmem>>, vector<1x128xf32>
    %32 = vector.broadcast %31 : vector<1x128xf32> to vector<8x128xf32>
    %33 = arith.addf %30, %32 : vector<8x128xf32>
    %cst_23 = arith.constant 1.000000e-01 : f32
    %34 = vector.broadcast %cst_23 : f32 to vector<8x128xf32>
    %35 = arith.mulf %34, %33 : vector<8x128xf32>
    %36 = arith.maximumf %33, %35 : vector<8x128xf32>
    %37 = arith.truncf %36 : vector<8x128xf32> to vector<8x128xbf16>
    %c0_24 = arith.constant 0 : index
    %c0_25 = arith.constant 0 : index
    %38 = vector.load %arg10[%c0_24, %c0_25] : memref<128x128xbf16, #tpu.memory_space<vmem>>, vector<128x128xbf16>
    %cst_26 = arith.constant dense<0.000000e+00> : vector<8x128xf32>
    %39 = tpu.matmul %37, %38, %cst_26 {dimension_numbers = #tpu.dot_dimension_numbers<[1], [0], [0], [1], [0, 0, 1, 1], [], []>} : vector<8x128xbf16>, vector<128x128xbf16>, vector<8x128xf32> -> vector<8x128xf32>
    %c0_27 = arith.constant 0 : index
    %c0_28 = arith.constant 0 : index
    %40 = vector.load %arg11[%c0_27, %c0_28] : memref<1x128xf32, #tpu.memory_space<vmem>>, vector<1x128xf32>
    %41 = vector.broadcast %40 : vector<1x128xf32> to vector<8x128xf32>
    %42 = arith.addf %39, %41 : vector<8x128xf32>
    %43 = tpu.iota {dimensions = array<i32: 1>} : vector<1x128xi32>
    %c64_i32 = arith.constant 64 : i32
    %44 = vector.broadcast %c64_i32 : i32 to vector<1x128xi32>
    %45 = arith.cmpi slt, %43, %44 : vector<1x128xi32>
    %cst_29 = arith.constant 1.000000e-01 : f32
    %cst_30 = arith.constant 1.000000e+00 : f32
    %46 = vector.broadcast %cst_29 : f32 to vector<1x128xf32>
    %47 = vector.broadcast %cst_30 : f32 to vector<1x128xf32>
    %48 = arith.select %45, %46, %47 : vector<1x128xi1>, vector<1x128xf32>
    %49 = vector.broadcast %48 : vector<1x128xf32> to vector<8x128xf32>
    %50 = arith.mulf %49, %42 : vector<8x128xf32>
    %51 = arith.maximumf %42, %50 : vector<8x128xf32>
    %c0_31 = arith.constant 0 : index
    %c0_32 = arith.constant 0 : index
    %52 = vector.load %arg12[%c0_31, %c0_32] : memref<8x128xf32, #tpu.memory_space<vmem>>, vector<8x128xf32>
    tpu.vector_store %arg12[%c0_31, %c0_32], %51 {strides = array<i32>} : memref<8x128xf32, #tpu.memory_space<vmem>>, vector<8x128xf32>,
    return
  }
  func.func @transform_0(%arg0: i32) -> (i32, i32) {
    %c0_i32 = arith.constant 0 : i32
    %c0_i32_0 = arith.constant 0 : i32
    return %arg0, %c0_i32 : i32, i32
  }
  func.func @transform_1(%arg0: i32) -> (i32, i32) {
    %c0_i32 = arith.constant 0 : i32
    %c0_i32_0 = arith.constant 0 : i32
    %c0_i32_1 = arith.constant 0 : i32
    return %c0_i32, %c0_i32_0 : i32, i32
  }
  func.func @transform_2(%arg0: i32) -> (i32, i32) {
    %c0_i32 = arith.constant 0 : i32
    %c0_i32_0 = arith.constant 0 : i32
    %c0_i32_1 = arith.constant 0 : i32
    return %c0_i32, %c0_i32_0 : i32, i32
  }
  func.func @transform_3(%arg0: i32) -> (i32, i32) {
    %c0_i32 = arith.constant 0 : i32
    %c0_i32_0 = arith.constant 0 : i32
    %c0_i32_1 = arith.constant 0 : i32
    return %c0_i32, %c0_i32_0 : i32, i32
  }
  func.func @transform_4(%arg0: i32) -> (i32, i32) {
    %c0_i32 = arith.constant 0 : i32
    %c0_i32_0 = arith.constant 0 : i32
    %c0_i32_1 = arith.constant 0 : i32
    return %c0_i32, %c0_i32_0 : i32, i32
  }
  func.func @transform_5(%arg0: i32) -> (i32, i32) {
    %c0_i32 = arith.constant 0 : i32
    %c0_i32_0 = arith.constant 0 : i32
    %c0_i32_1 = arith.constant 0 : i32
    return %c0_i32, %c0_i32_0 : i32, i32
  }
  func.func @transform_6(%arg0: i32) -> (i32, i32) {
    %c0_i32 = arith.constant 0 : i32
    %c0_i32_0 = arith.constant 0 : i32
    %c0_i32_1 = arith.constant 0 : i32
    return %c0_i32, %c0_i32_0 : i32, i32
  }
  func.func @transform_7(%arg0: i32) -> (i32, i32) {
    %c0_i32 = arith.constant 0 : i32
    %c0_i32_0 = arith.constant 0 : i32
    %c0_i32_1 = arith.constant 0 : i32
    return %c0_i32, %c0_i32_0 : i32, i32
  }
  func.func @transform_8(%arg0: i32) -> (i32, i32) {
    %c0_i32 = arith.constant 0 : i32
    %c0_i32_0 = arith.constant 0 : i32
    %c0_i32_1 = arith.constant 0 : i32
    return %c0_i32, %c0_i32_0 : i32, i32
  }
  func.func @transform_9(%arg0: i32) -> (i32, i32) {
    %c0_i32 = arith.constant 0 : i32
    %c0_i32_0 = arith.constant 0 : i32
    %c0_i32_1 = arith.constant 0 : i32
    return %c0_i32, %c0_i32_0 : i32, i32
  }
  func.func @transform_10(%arg0: i32) -> (i32, i32) {
    %c0_i32 = arith.constant 0 : i32
    %c0_i32_0 = arith.constant 0 : i32
    %c0_i32_1 = arith.constant 0 : i32
    return %c0_i32, %c0_i32_0 : i32, i32
  }
  func.func @transform_11(%arg0: i32) -> (i32, i32) {
    %c0_i32 = arith.constant 0 : i32
    %c0_i32_0 = arith.constant 0 : i32
    return %arg0, %c0_i32 : i32, i32
  }
}

</mosaic_0001>

<llo_original>
// kernel: bpw_mlp_forward.1
$region0: #{bpw_mlp_forward.1}
  #allocation0 [shape = 'u32[]', space=smem, size = 0x4, offset = 0x4, fixed_abs, tag = 'smem constant byte address 0x4 - core index']
  #allocation1 [shape = 'u32[72,128]{1,0:T(1,128)}', space=vmem, size = 0x9000, scoped, tag = 'internal scratch']
  %s0 = inlined_call_operand.vmem [shape: f32[8,24], index: 0, kind: input, shape index: {}]
  %s1 = inlined_call_operand.hbm [shape: bf16[24,256], index: 1, kind: input, shape index: {}]
  %s2 = inlined_call_operand.vmem [shape: f32[1,256], index: 2, kind: input, shape index: {}]
  %s3 = inlined_call_operand.hbm [shape: bf16[256,256], index: 3, kind: input, shape index: {}]
  %s4 = inlined_call_operand.vmem [shape: f32[1,256], index: 4, kind: input, shape index: {}]
  %s5 = inlined_call_operand.hbm [shape: bf16[256,128], index: 5, kind: input, shape index: {}]
  %s6 = inlined_call_operand.vmem [shape: f32[1,128], index: 6, kind: input, shape index: {}]
  %s7 = inlined_call_operand.hbm [shape: bf16[128,128], index: 7, kind: input, shape index: {}]
  %s8 = inlined_call_operand.vmem [shape: f32[1,128], index: 8, kind: input, shape index: {}]
  %s9 = inlined_call_operand.hbm [shape: bf16[128,128], index: 9, kind: input, shape index: {}]
  %s10 = inlined_call_operand.vmem [shape: f32[1,128], index: 10, kind: input, shape index: {}]
  %s11 = inlined_call_operand.vmem [shape: f32[8,128], index: 11, kind: output, shape index: {}]
  %s12 = sld [smem:[#allocation0]]
  $region74: #{bpw_mlp_forward.1} parent=0
    _
  %s14 = ssub.s32 1, %s12
  %s15 = scalar_select 0, %s14, %s12
  $region1: #{bpw_mlp_forward.1} parent=0
    #allocation2 [shape = 'u8[12288]{0}', space=vmem, size = 0x3000, scoped, tag = 'input window, operand 1, single buffered']
    #allocation3 [shape = 's32[1]{0}', space=sflag, size = 0x4, scoped, tag = 'scoped memory for bpw_mlp_forward.1']
    #allocation4 [shape = 'u8[131072]{0}', space=vmem, size = 0x20000, scoped, tag = 'input window, operand 3, single buffered']
    #allocation5 [shape = 's32[1]{0}', space=sflag, size = 0x4, scoped, tag = 'scoped memory for bpw_mlp_forward.1']
    #allocation6 [shape = 'u8[65536]{0}', space=vmem, size = 0x10000, scoped, tag = 'input window, operand 5, single buffered']
    #allocation7 [shape = 'u8[32768]{0}', space=vmem, size = 0x8000, scoped, tag = 'input window, operand 7, single buffered']
    #allocation8 [shape = 's32[1]{0}', space=sflag, size = 0x4, scoped, tag = 'scoped memory for bpw_mlp_forward.1']
    #allocation9 [shape = 'u8[32768]{0}', space=vmem, size = 0x8000, scoped, tag = 'input window, operand 9, single buffered']
    %16 = vsyncpa [#allocation3], 0
    %17 = vsyncpa [#allocation5], 0
    %18 = vsyncpa [#allocation8], 0
    // Predicated region
    $region2: #{bpw_mlp_forward.1} parent=1 // pred_check
      _
    $region3: #{bpw_mlp_forward.1} parent=1 // pred_check_branch
      %20 = sbr.rel (0) target = $region5
    $region4: #{bpw_mlp_forward.1} parent=1 // pred_region
      _
    $region5: #{bpw_mlp_forward.1} parent=1 // pred_fallthru
      _
    // Predicated region
    $region6: #{bpw_mlp_forward.1} parent=1 // pred_check
      _
    $region7: #{bpw_mlp_forward.1} parent=1 // pred_check_branch
      %22 = sbr.rel (0) target = $region9
    $region8: #{bpw_mlp_forward.1} parent=1 // pred_region
      %24 = vsyncadd [#allocation3], 0
      %s25 = sshll.u32 %s1, 4
      %s26 = int_to_ptr.hbm [resolvable:$true] %s25
      %s27 = sshll.u32 [#allocation2], 4
      %s28 = int_to_ptr.vmem [resolvable:$true] %s27
      %33 = dma.hbm_to_vmem [thread:$0]  %s26, 384, %s28, [#allocation3], 128, 128, 8
    $region9: #{bpw_mlp_forward.1} parent=1 // pred_fallthru
      _
    // Predicated region
    $region10: #{bpw_mlp_forward.1} parent=1 // pred_check
      _
    $region11: #{bpw_mlp_forward.1} parent=1 // pred_check_branch
      %35 = sbr.rel (0) target = $region13
    $region12: #{bpw_mlp_forward.1} parent=1 // pred_region
      _
    $region13: #{bpw_mlp_forward.1} parent=1 // pred_fallthru
      _
    // Predicated region
    $region14: #{bpw_mlp_forward.1} parent=1 // pred_check
      _
    $region15: #{bpw_mlp_forward.1} parent=1 // pred_check_branch
      %37 = sbr.rel (0) target = $region17
    $region16: #{bpw_mlp_forward.1} parent=1 // pred_region
      %39 = vsyncadd [#allocation5], 0
      %s40 = sshll.u32 %s3, 4
      %s41 = int_to_ptr.hbm [resolvable:$true] %s40
      %s42 = sshll.u32 [#allocation4], 4
      %s43 = int_to_ptr.vmem [resolvable:$true] %s42
      %48 = dma.hbm_to_vmem [thread:$0]  %s41, 4096, %s43, [#allocation5], 128, 128, 8
    $region17: #{bpw_mlp_forward.1} parent=1 // pred_fallthru
      _
    // Predicated region
    $region18: #{bpw_mlp_forward.1} parent=1 // pred_check
      _
    $region19: #{bpw_mlp_forward.1} parent=1 // pred_check_branch
      %50 = sbr.rel (0) target = $region21
    $region20: #{bpw_mlp_forward.1} parent=1 // pred_region
      _
    $region21: #{bpw_mlp_forward.1} parent=1 // pred_fallthru
      _
    // Predicated region
    $region22: #{bpw_mlp_forward.1} parent=1 // pred_check
      _
    $region23: #{bpw_mlp_forward.1} parent=1 // pred_check_branch
      %52 = sbr.rel (0) target = $region25
    $region24: #{bpw_mlp_forward.1} parent=1 // pred_region
      %54 = vsyncadd [#allocation5], 0
      %s55 = sshll.u32 %s5, 4
      %s56 = int_to_ptr.hbm [resolvable:$true] %s55
      %s57 = sshll.u32 [#allocation6], 4
      %s58 = int_to_ptr.vmem [resolvable:$true] %s57
      %63 = dma.hbm_to_vmem [thread:$0]  %s56, 2048, %s58, [#allocation5], 64, 64, 4
    $region25: #{bpw_mlp_forward.1} parent=1 // pred_fallthru
      _
    // Predicated region
    $region26: #{bpw_mlp_forward.1} parent=1 // pred_check
      _
    $region27: #{bpw_mlp_forward.1} parent=1 // pred_check_branch
      %65 = sbr.rel (0) target = $region29
    $region28: #{bpw_mlp_forward.1} parent=1 // pred_region
      _
    $region29: #{bpw_mlp_forward.1} parent=1 // pred_fallthru
      _
    // Predicated region
    $region30: #{bpw_mlp_forward.1} parent=1 // pred_check
      _
    $region31: #{bpw_mlp_forward.1} parent=1 // pred_check_branch
      %67 = sbr.rel (0) target = $region33
    $region32: #{bpw_mlp_forward.1} parent=1 // pred_region
      %69 = vsyncadd [#allocation8], 0
      %s70 = sshll.u32 %s7, 4
      %s71 = int_to_ptr.hbm [resolvable:$true] %s70
      %s72 = sshll.u32 [#allocation7], 4
      %s73 = int_to_ptr.vmem [resolvable:$true] %s72
      %78 = dma.hbm_to_vmem [thread:$0]  %s71, 1024, %s73, [#allocation8], 64, 64, 4
    $region33: #{bpw_mlp_forward.1} parent=1 // pred_fallthru
      _
    // Predicated region
    $region34: #{bpw_mlp_forward.1} parent=1 // pred_check
      _
    $region35: #{bpw_mlp_forward.1} parent=1 // pred_check_branch
      %80 = sbr.rel (0) target = $region37
    $region36: #{bpw_mlp_forward.1} parent=1 // pred_region
      _
    $region37: #{bpw_mlp_forward.1} parent=1 // pred_fallthru
      _
    // Predicated region
    $region38: #{bpw_mlp_forward.1} parent=1 // pred_check
      _
    $region39: #{bpw_mlp_forward.1} parent=1 // pred_check_branch
      %82 = sbr.rel (0) target = $region41
    $region40: #{bpw_mlp_forward.1} parent=1 // pred_region
      %84 = vsyncadd [#allocation8], 0
      %s85 = sshll.u32 %s9, 4
      %s86 = int_to_ptr.hbm [resolvable:$true] %s85
      %s87 = sshll.u32 [#allocation9], 4
      %s88 = int_to_ptr.vmem [resolvable:$true] %s87
      %93 = dma.hbm_to_vmem [thread:$0]  %s86, 1024, %s88, [#allocation8], 64, 64, 4
    $region41: #{bpw_mlp_forward.1} parent=1 // pred_fallthru
      _
    // Predicated region
    $region42: #{bpw_mlp_forward.1} parent=1 // pred_check
      _
    $region43: #{bpw_mlp_forward.1} parent=1 // pred_check_branch
      %95 = sbr.rel (0) target = $region45
    $region44: #{bpw_mlp_forward.1} parent=1 // pred_region
      _
    $region45: #{bpw_mlp_forward.1} parent=1 // pred_fallthru
      _
    // Predicated region
    $region46: #{bpw_mlp_forward.1} parent=1 // pred_check
      _
    $region47: #{bpw_mlp_forward.1} parent=1 // pred_check_branch
      %97 = sbr.rel (0) target = $region49
    $region48: #{bpw_mlp_forward.1} parent=1 // pred_region
      %99 = dma.done [#allocation3], 384
    $region49: #{bpw_mlp_forward.1} parent=1 // pred_fallthru
      _
    // Predicated region
    $region50: #{bpw_mlp_forward.1} parent=1 // pred_check
      _
    $region51: #{bpw_mlp_forward.1} parent=1 // pred_check_branch
      %101 = sbr.rel (0) target = $region53
    $region52: #{bpw_mlp_forward.1} parent=1 // pred_region
      %103 = dma.done [#allocation5], 4096
    $region53: #{bpw_mlp_forward.1} parent=1 // pred_fallthru
      _
    // Predicated region
    $region54: #{bpw_mlp_forward.1} parent=1 // pred_check
      _
    $region55: #{bpw_mlp_forward.1} parent=1 // pred_check_branch
      %105 = sbr.rel (0) target = $region57
    $region56: #{bpw_mlp_forward.1} parent=1 // pred_region
      %107 = dma.done [#allocation5], 2048
    $region57: #{bpw_mlp_forward.1} parent=1 // pred_fallthru
      _
    // Predicated region
    $region58: #{bpw_mlp_forward.1} parent=1 // pred_check
      _
    $region59: #{bpw_mlp_forward.1} parent=1 // pred_check_branch
      %109 = sbr.rel (0) target = $region61
    $region60: #{bpw_mlp_forward.1} parent=1 // pred_region
      %111 = dma.done [#allocation8], 1024
    $region61: #{bpw_mlp_forward.1} parent=1 // pred_fallthru
      _
    // Predicated region
    $region62: #{bpw_mlp_forward.1} parent=1 // pred_check
      _
    $region63: #{bpw_mlp_forward.1} parent=1 // pred_check_branch
      %113 = sbr.rel (0) target = $region65
    $region64: #{bpw_mlp_forward.1} parent=1 // pred_region
      %115 = dma.done [#allocation8], 1024
    $region65: #{bpw_mlp_forward.1} parent=1 // pred_fallthru
      _
    %v117 = vld [vmem:[%s0] sm:$0xff]
    %v118 = vpack.c.bf16 %v117, %v117
    %v119 = vld [vmem:[#allocation2] sm:$0xff]
    %v120 = vld [vmem:[#allocation2 + $0x8] sm:$0xff]
    %v121 = vld [vmem:[#allocation2 + $0x10] sm:$0xff]
    %v122 = vld [vmem:[%s2] sm:$0x3]
    %v124 = vperm.slane %v122, 0
    %v125 = vperm.slane %v122, 1
    %v131 = vunpack.c.l.b16 %v119
    %v132 = vunpack.c.h.b16 %v119
    %v133 = vunpack.c.l.b16 %v120
    %v134 = vunpack.c.h.b16 %v120
    %v135 = vunpack.c.l.b16 %v121
    %v136 = vunpack.c.h.b16 %v121
    %v137 = vpack.c.b16 %v133, %v131
    %v138 = vpack.c.b16 %v134, %v132
    %v139 = vpack.c.b16 %v135, %v135
    %v140 = vpack.c.b16 %v136, %v136
    %vm143 = vcmask 195584
    %v145 = vsel %vm143, %v118, 0
    %vm147 = vcmask 1043456
    %v149 = vsel %vm147, %v139, 0
    %v152 = vsel %vm147, %v140, 0
    %154 = vmatpush.bf16.msra.mxu0 0
    %155 = vmatpush.bf16.msra.mxu0 0
    %156 = vmatpush.bf16.msra.mxu0 0
    %157 = vmatpush.bf16.msra.mxu0 0
    %158 = vmatpush.bf16.msra.mxu0 0
    %159 = vmatpush.bf16.msra.mxu0 0
    %160 = vmatpush.bf16.msra.mxu0 %v149
    %161 = vmatpush.bf16.msra.mxu0 %v137
    %162 = vmatmul.bf16.gmra.mxu0 %v145
    %v163 = vpop.f32.mrf.mxu0
    %v164 = vadd.f32 %v124, %v163
    %v165 = vpop.f32.mrf.mxu0
    %166 = vdwg.mxu0
    %167 = vmatpush.bf16.msra.mxu0 0
    %168 = vmatpush.bf16.msra.mxu0 0
    %169 = vmatpush.bf16.msra.mxu0 0
    %170 = vmatpush.bf16.msra.mxu0 0
    %171 = vmatpush.bf16.msra.mxu0 0
    %172 = vmatpush.bf16.msra.mxu0 0
    %173 = vmatpush.bf16.msra.mxu0 %v152
    %174 = vmatpush.bf16.msra.mxu0 %v138
    %175 = vmatmul.bf16.gmra.mxu0 %v145
    %v176 = vpop.f32.mrf.mxu0
    %v177 = vadd.f32 %v125, %v176
    %v178 = vpop.f32.mrf.mxu0
    %179 = vdwg.mxu0
    %v180 = vmul.f32 %v164, 0.1
    %v181 = vmul.f32 %v177, 0.1
    %v182 = vmax.f32 %v164, %v180
    %v183 = vmax.f32 %v177, %v181
    %v184 = vpack.c.bf16 %v182, %v182
    %v185 = vpack.c.bf16 %v183, %v183
    %v186 = vld [vmem:[#allocation4] sm:$0xff]
    %v187 = vld [vmem:[#allocation4 + $0x8] sm:$0xff]
    %v188 = vld [vmem:[#allocation4 + $0x10] sm:$0xff]
    %v189 = vld [vmem:[#allocation4 + $0x18] sm:$0xff]
    %v190 = vld [vmem:[#allocation4 + $0x20] sm:$0xff]
    %v191 = vld [vmem:[#allocation4 + $0x28] sm:$0xff]
    %v192 = vld [vmem:[#allocation4 + $0x30] sm:$0xff]
    %v193 = vld [vmem:[#allocation4 + $0x38] sm:$0xff]
    %v194 = vld [vmem:[#allocation4 + $0x40] sm:$0xff]
    %v195 = vld [vmem:[#allocation4 + $0x48] sm:$0xff]
    %v196 = vld [vmem:[#allocation4 + $0x50] sm:$0xff]
    %v197 = vld [vmem:[#allocation4 + $0x58] sm:$0xff]
    %v198 = vld [vmem:[#allocation4 + $0x60] sm:$0xff]
    %v199 = vld [vmem:[#allocation4 + $0x68] sm:$0xff]
    %v200 = vld [vmem:[#allocation4 + $0x70] sm:$0xff]
    %v201 = vld [vmem:[#allocation4 + $0x78] sm:$0xff]
    %v202 = vld [vmem:[#allocation4 + $0x80] sm:$0xff]
    %v203 = vld [vmem:[#allocation4 + $0x88] sm:$0xff]
    %v204 = vld [vmem:[#allocation4 + $0x90] sm:$0xff]
    %v205 = vld [vmem:[#allocation4 + $0x98] sm:$0xff]
    %v206 = vld [vmem:[#allocation4 + $0xa0] sm:$0xff]
    %v207 = vld [vmem:[#allocation4 + $0xa8] sm:$0xff]
    %v208 = vld [vmem:[#allocation4 + $0xb0] sm:$0xff]
    %v209 = vld [vmem:[#allocation4 + $0xb8] sm:$0xff]
    %v210 = vld [vmem:[#allocation4 + $0xc0] sm:$0xff]
    %v211 = vld [vmem:[#allocation4 + $0xc8] sm:$0xff]
    %v212 = vld [vmem:[#allocation4 + $0xd0] sm:$0xff]
    %v213 = vld [vmem:[#allocation4 + $0xd8] sm:$0xff]
    %v214 = vld [vmem:[#allocation4 + $0xe0] sm:$0xff]
    %v215 = vld [vmem:[#allocation4 + $0xe8] sm:$0xff]
    %v216 = vld [vmem:[#allocation4 + $0xf0] sm:$0xff]
    %v217 = vld [vmem:[#allocation4 + $0xf8] sm:$0xff]
    %v218 = vld [vmem:[%s4] sm:$0x3]
    %v220 = vperm.slane %v218, 0
    %v221 = vperm.slane %v218, 1
    %v256 = vunpack.c.l.b16 %v186
    %v257 = vunpack.c.h.b16 %v186
    %v258 = vunpack.c.l.b16 %v187
    %v259 = vunpack.c.h.b16 %v187
    %v260 = vunpack.c.l.b16 %v188
    %v261 = vunpack.c.h.b16 %v188
    %v262 = vunpack.c.l.b16 %v189
    %v263 = vunpack.c.h.b16 %v189
    %v264 = vunpack.c.l.b16 %v190
    %v265 = vunpack.c.h.b16 %v190
    %v266 = vunpack.c.l.b16 %v191
    %v267 = vunpack.c.h.b16 %v191
    %v268 = vunpack.c.l.b16 %v192
    %v269 = vunpack.c.h.b16 %v192
    %v270 = vunpack.c.l.b16 %v193
    %v271 = vunpack.c.h.b16 %v193
    %v272 = vunpack.c.l.b16 %v194
    %v273 = vunpack.c.h.b16 %v194
    %v274 = vunpack.c.l.b16 %v195
    %v275 = vunpack.c.h.b16 %v195
    %v276 = vunpack.c.l.b16 %v196
    %v277 = vunpack.c.h.b16 %v196
    %v278 = vunpack.c.l.b16 %v197
    %v279 = vunpack.c.h.b16 %v197
    %v280 = vunpack.c.l.b16 %v198
    %v281 = vunpack.c.h.b16 %v198
    %v282 = vunpack.c.l.b16 %v199
    %v283 = vunpack.c.h.b16 %v199
    %v284 = vunpack.c.l.b16 %v200
    %v285 = vunpack.c.h.b16 %v200
    %v286 = vunpack.c.l.b16 %v201
    %v287 = vunpack.c.h.b16 %v201
    %v288 = vunpack.c.l.b16 %v202
    %v289 = vunpack.c.h.b16 %v202
    %v290 = vunpack.c.l.b16 %v203
    %v291 = vunpack.c.h.b16 %v203
    %v292 = vunpack.c.l.b16 %v204
    %v293 = vunpack.c.h.b16 %v204
    %v294 = vunpack.c.l.b16 %v205
    %v295 = vunpack.c.h.b16 %v205
    %v296 = vunpack.c.l.b16 %v206
    %v297 = vunpack.c.h.b16 %v206
    %v298 = vunpack.c.l.b16 %v207
    %v299 = vunpack.c.h.b16 %v207
    %v300 = vunpack.c.l.b16 %v208
    %v301 = vunpack.c.h.b16 %v208
    %v302 = vunpack.c.l.b16 %v209
    %v303 = vunpack.c.h.b16 %v209
    %v304 = vunpack.c.l.b16 %v210
    %v305 = vunpack.c.h.b16 %v210
    %v306 = vunpack.c.l.b16 %v211
    %v307 = vunpack.c.h.b16 %v211
    %v308 = vunpack.c.l.b16 %v212
    %v309 = vunpack.c.h.b16 %v212
    %v310 = vunpack.c.l.b16 %v213
    %v311 = vunpack.c.h.b16 %v213
    %v312 = vunpack.c.l.b16 %v214
    %v313 = vunpack.c.h.b16 %v214
    %v314 = vunpack.c.l.b16 %v215
    %v315 = vunpack.c.h.b16 %v215
    %v316 = vunpack.c.l.b16 %v216
    %v317 = vunpack.c.h.b16 %v216
    %v318 = vunpack.c.l.b16 %v217
    %v319 = vunpack.c.h.b16 %v217
    %v320 = vpack.c.b16 %v258, %v256
    %v321 = vpack.c.b16 %v259, %v257
    %v322 = vpack.c.b16 %v262, %v260
    %v323 = vpack.c.b16 %v263, %v261
    %v324 = vpack.c.b16 %v266, %v264
    %v325 = vpack.c.b16 %v267, %v265
    %v326 = vpack.c.b16 %v270, %v268
    %v327 = vpack.c.b16 %v271, %v269
    %v328 = vpack.c.b16 %v274, %v272
    %v329 = vpack.c.b16 %v275, %v273
    %v330 = vpack.c.b16 %v278, %v276
    %v331 = vpack.c.b16 %v279, %v277
    %v332 = vpack.c.b16 %v282, %v280
    %v333 = vpack.c.b16 %v283, %v281
    %v334 = vpack.c.b16 %v286, %v284
    %v335 = vpack.c.b16 %v287, %v285
    %v336 = vpack.c.b16 %v290, %v288
    %v337 = vpack.c.b16 %v291, %v289
    %v338 = vpack.c.b16 %v294, %v292
    %v339 = vpack.c.b16 %v295, %v293
    %v340 = vpack.c.b16 %v298, %v296
    %v341 = vpack.c.b16 %v299, %v297
    %v342 = vpack.c.b16 %v302, %v300
    %v343 = vpack.c.b16 %v303, %v301
    %v344 = vpack.c.b16 %v306, %v304
    %v345 = vpack.c.b16 %v307, %v305
    %v346 = vpack.c.b16 %v310, %v308
    %v347 = vpack.c.b16 %v311, %v309
    %v348 = vpack.c.b16 %v314, %v312
    %v349 = vpack.c.b16 %v315, %v313
    %v350 = vpack.c.b16 %v318, %v316
    %v351 = vpack.c.b16 %v319, %v317
    %384 = vmatpush.bf16.msra.mxu0 %v334
    %385 = vmatpush.bf16.msra.mxu0 %v332
    %386 = vmatpush.bf16.msra.mxu0 %v330
    %387 = vmatpush.bf16.msra.mxu0 %v328
    %388 = vmatpush.bf16.msra.mxu0 %v326
    %389 = vmatpush.bf16.msra.mxu0 %v324
    %390 = vmatpush.bf16.msra.mxu0 %v322
    %391 = vmatpush.bf16.msra.mxu0 %v320
    %392 = vmatmul.bf16.gmra.mxu0 %v184
    %v393 = vpop.f32.mrf.mxu0
    %v394 = vadd.f32 %v220, %v393
    %v395 = vpop.f32.mrf.mxu0
    %396 = vdwg.mxu0
    %397 = vmatpush.bf16.msra.mxu0 %v350
    %398 = vmatpush.bf16.msra.mxu0 %v348
    %399 = vmatpush.bf16.msra.mxu0 %v346
    %400 = vmatpush.bf16.msra.mxu0 %v344
    %401 = vmatpush.bf16.msra.mxu0 %v342
    %402 = vmatpush.bf16.msra.mxu0 %v340
    %403 = vmatpush.bf16.msra.mxu0 %v338
    %404 = vmatpush.bf16.msra.mxu0 %v336
    %405 = vmatmul.bf16.gmra.mxu0 %v185
    %v406 = vpop.f32.mrf.mxu0
    %v407 = vadd.f32 %v394, %v406
    %v408 = vpop.f32.mrf.mxu0
    %409 = vdwg.mxu0
    %410 = vmatpush.bf16.msra.mxu0 %v335
    %411 = vmatpush.bf16.msra.mxu0 %v333
    %412 = vmatpush.bf16.msra.mxu0 %v331
    %413 = vmatpush.bf16.msra.mxu0 %v329
    %414 = vmatpush.bf16.msra.mxu0 %v327
    %415 = vmatpush.bf16.msra.mxu0 %v325
    %416 = vmatpush.bf16.msra.mxu0 %v323
    %417 = vmatpush.bf16.msra.mxu0 %v321
    %418 = vmatmul.bf16.gmra.mxu0 %v184
    %v419 = vpop.f32.mrf.mxu0
    %v420 = vadd.f32 %v221, %v419
    %v421 = vpop.f32.mrf.mxu0
    %422 = vdwg.mxu0
    %423 = vmatpush.bf16.msra.mxu0 %v351
    %424 = vmatpush.bf16.msra.mxu0 %v349
    %425 = vmatpush.bf16.msra.mxu0 %v347
    %426 = vmatpush.bf16.msra.mxu0 %v345
    %427 = vmatpush.bf16.msra.mxu0 %v343
    %428 = vmatpush.bf16.msra.mxu0 %v341
    %429 = vmatpush.bf16.msra.mxu0 %v339
    %430 = vmatpush.bf16.msra.mxu0 %v337
    %431 = vmatmul.bf16.gmra.mxu0 %v185
    %v432 = vpop.f32.mrf.mxu0
    %v433 = vadd.f32 %v420, %v432
    %v434 = vpop.f32.mrf.mxu0
    %435 = vdwg.mxu0
    %v436 = vmul.f32 %v407, 0.1
    %v437 = vmul.f32 %v433, 0.1
    %v438 = vmax.f32 %v407, %v436
    %v439 = vmax.f32 %v433, %v437
    %v440 = vpack.c.bf16 %v438, %v438
    %v441 = vpack.c.bf16 %v439, %v439
    %v442 = vld [vmem:[#allocation6] sm:$0xf]
    %v443 = vld [vmem:[#allocation6 + $0x4] sm:$0xf]
    %v444 = vld [vmem:[#allocation6 + $0x8] sm:$0xf]
    %v445 = vld [vmem:[#allocation6 + $0xc] sm:$0xf]
    %v446 = vld [vmem:[#allocation6 + $0x10] sm:$0xf]
    %v447 = vld [vmem:[#allocation6 + $0x14] sm:$0xf]
    %v448 = vld [vmem:[#allocation6 + $0x18] sm:$0xf]
    %v449 = vld [vmem:[#allocation6 + $0x1c] sm:$0xf]
    %v450 = vld [vmem:[#allocation6 + $0x20] sm:$0xf]
    %v451 = vld [vmem:[#allocation6 + $0x24] sm:$0xf]
    %v452 = vld [vmem:[#allocation6 + $0x28] sm:$0xf]
    %v453 = vld [vmem:[#allocation6 + $0x2c] sm:$0xf]
    %v454 = vld [vmem:[#allocation6 + $0x30] sm:$0xf]
    %v455 = vld [vmem:[#allocation6 + $0x34] sm:$0xf]
    %v456 = vld [vmem:[#allocation6 + $0x38] sm:$0xf]
    %v457 = vld [vmem:[#allocation6 + $0x3c] sm:$0xf]
    %v458 = vld [vmem:[#allocation6 + $0x40] sm:$0xf]
    %v459 = vld [vmem:[#allocation6 + $0x44] sm:$0xf]
    %v460 = vld [vmem:[#allocation6 + $0x48] sm:$0xf]
    %v461 = vld [vmem:[#allocation6 + $0x4c] sm:$0xf]
    %v462 = vld [vmem:[#allocation6 + $0x50] sm:$0xf]
    %v463 = vld [vmem:[#allocation6 + $0x54] sm:$0xf]
    %v464 = vld [vmem:[#allocation6 + $0x58] sm:$0xf]
    %v465 = vld [vmem:[#allocation6 + $0x5c] sm:$0xf]
    %v466 = vld [vmem:[#allocation6 + $0x60] sm:$0xf]
    %v467 = vld [vmem:[#allocation6 + $0x64] sm:$0xf]
    %v468 = vld [vmem:[#allocation6 + $0x68] sm:$0xf]
    %v469 = vld [vmem:[#allocation6 + $0x6c] sm:$0xf]
    %v470 = vld [vmem:[#allocation6 + $0x70] sm:$0xf]
    %v471 = vld [vmem:[#allocation6 + $0x74] sm:$0xf]
    %v472 = vld [vmem:[#allocation6 + $0x78] sm:$0xf]
    %v473 = vld [vmem:[#allocation6 + $0x7c] sm:$0xf]
    %v474 = vld [vmem:[%s6] sm:$0x1]
    %v476 = vperm.slane %v474, 0
    %v510 = vunpack.c.l.b16 %v442
    %v511 = vunpack.c.l.b16 %v443
    %v512 = vunpack.c.l.b16 %v444
    %v513 = vunpack.c.l.b16 %v445
    %v514 = vunpack.c.l.b16 %v446
    %v515 = vunpack.c.l.b16 %v447
    %v516 = vunpack.c.l.b16 %v448
    %v517 = vunpack.c.l.b16 %v449
    %v518 = vunpack.c.l.b16 %v450
    %v519 = vunpack.c.l.b16 %v451
    %v520 = vunpack.c.l.b16 %v452
    %v521 = vunpack.c.l.b16 %v453
    %v522 = vunpack.c.l.b16 %v454
    %v523 = vunpack.c.l.b16 %v455
    %v524 = vunpack.c.l.b16 %v456
    %v525 = vunpack.c.l.b16 %v457
    %v526 = vunpack.c.l.b16 %v458
    %v527 = vunpack.c.l.b16 %v459
    %v528 = vunpack.c.l.b16 %v460
    %v529 = vunpack.c.l.b16 %v461
    %v530 = vunpack.c.l.b16 %v462
    %v531 = vunpack.c.l.b16 %v463
    %v532 = vunpack.c.l.b16 %v464
    %v533 = vunpack.c.l.b16 %v465
    %v534 = vunpack.c.l.b16 %v466
    %v535 = vunpack.c.l.b16 %v467
    %v536 = vunpack.c.l.b16 %v468
    %v537 = vunpack.c.l.b16 %v469
    %v538 = vunpack.c.l.b16 %v470
    %v539 = vunpack.c.l.b16 %v471
    %v540 = vunpack.c.l.b16 %v472
    %v541 = vunpack.c.l.b16 %v473
    %v542 = vpack.c.b16 %v511, %v510
    %v543 = vpack.c.b16 %v513, %v512
    %v544 = vpack.c.b16 %v515, %v514
    %v545 = vpack.c.b16 %v517, %v516
    %v546 = vpack.c.b16 %v519, %v518
    %v547 = vpack.c.b16 %v521, %v520
    %v548 = vpack.c.b16 %v523, %v522
    %v549 = vpack.c.b16 %v525, %v524
    %v550 = vpack.c.b16 %v527, %v526
    %v551 = vpack.c.b16 %v529, %v528
    %v552 = vpack.c.b16 %v531, %v530
    %v553 = vpack.c.b16 %v533, %v532
    %v554 = vpack.c.b16 %v535, %v534
    %v555 = vpack.c.b16 %v537, %v536
    %v556 = vpack.c.b16 %v539, %v538
    %v557 = vpack.c.b16 %v541, %v540
    %574 = vmatpush.bf16.msra.mxu0 %v549
    %575 = vmatpush.bf16.msra.mxu0 %v548
    %576 = vmatpush.bf16.msra.mxu0 %v547
    %577 = vmatpush.bf16.msra.mxu0 %v546
    %578 = vmatpush.bf16.msra.mxu0 %v545
    %579 = vmatpush.bf16.msra.mxu0 %v544
    %580 = vmatpush.bf16.msra.mxu0 %v543
    %581 = vmatpush.bf16.msra.mxu0 %v542
    %582 = vmatmul.bf16.gmra.mxu0 %v440
    %v583 = vpop.f32.mrf.mxu0
    %v584 = vadd.f32 %v476, %v583
    %v585 = vpop.f32.mrf.mxu0
    %586 = vdwg.mxu0
    %587 = vmatpush.bf16.msra.mxu0 %v557
    %588 = vmatpush.bf16.msra.mxu0 %v556
    %589 = vmatpush.bf16.msra.mxu0 %v555
    %590 = vmatpush.bf16.msra.mxu0 %v554
    %591 = vmatpush.bf16.msra.mxu0 %v553
    %592 = vmatpush.bf16.msra.mxu0 %v552
    %593 = vmatpush.bf16.msra.mxu0 %v551
    %594 = vmatpush.bf16.msra.mxu0 %v550
    %595 = vmatmul.bf16.gmra.mxu0 %v441
    %v596 = vpop.f32.mrf.mxu0
    %v597 = vadd.f32 %v584, %v596
    %v598 = vpop.f32.mrf.mxu0
    %599 = vdwg.mxu0
    %v600 = vmul.f32 %v597, 0.1
    %v601 = vmax.f32 %v597, %v600
    %v602 = vpack.c.bf16 %v601, %v601
    %v603 = vld [vmem:[#allocation7] sm:$0xf]
    %v604 = vld [vmem:[#allocation7 + $0x4] sm:$0xf]
    %v605 = vld [vmem:[#allocation7 + $0x8] sm:$0xf]
    %v606 = vld [vmem:[#allocation7 + $0xc] sm:$0xf]
    %v607 = vld [vmem:[#allocation7 + $0x10] sm:$0xf]
    %v608 = vld [vmem:[#allocation7 + $0x14] sm:$0xf]
    %v609 = vld [vmem:[#allocation7 + $0x18] sm:$0xf]
    %v610 = vld [vmem:[#allocation7 + $0x1c] sm:$0xf]
    %v611 = vld [vmem:[#allocation7 + $0x20] sm:$0xf]
    %v612 = vld [vmem:[#allocation7 + $0x24] sm:$0xf]
    %v613 = vld [vmem:[#allocation7 + $0x28] sm:$0xf]
    %v614 = vld [vmem:[#allocation7 + $0x2c] sm:$0xf]
    %v615 = vld [vmem:[#allocation7 + $0x30] sm:$0xf]
    %v616 = vld [vmem:[#allocation7 + $0x34] sm:$0xf]
    %v617 = vld [vmem:[#allocation7 + $0x38] sm:$0xf]
    %v618 = vld [vmem:[#allocation7 + $0x3c] sm:$0xf]
    %v619 = vld [vmem:[%s8] sm:$0x1]
    %v621 = vperm.slane %v619, 0
    %v639 = vunpack.c.l.b16 %v603
    %v640 = vunpack.c.l.b16 %v604
    %v641 = vunpack.c.l.b16 %v605
    %v642 = vunpack.c.l.b16 %v606
    %v643 = vunpack.c.l.b16 %v607
    %v644 = vunpack.c.l.b16 %v608
    %v645 = vunpack.c.l.b16 %v609
    %v646 = vunpack.c.l.b16 %v610
    %v647 = vunpack.c.l.b16 %v611
    %v648 = vunpack.c.l.b16 %v612
    %v649 = vunpack.c.l.b16 %v613
    %v650 = vunpack.c.l.b16 %v614
    %v651 = vunpack.c.l.b16 %v615
    %v652 = vunpack.c.l.b16 %v616
    %v653 = vunpack.c.l.b16 %v617
    %v654 = vunpack.c.l.b16 %v618
    %v655 = vpack.c.b16 %v640, %v639
    %v656 = vpack.c.b16 %v642, %v641
    %v657 = vpack.c.b16 %v644, %v643
    %v658 = vpack.c.b16 %v646, %v645
    %v659 = vpack.c.b16 %v648, %v647
    %v660 = vpack.c.b16 %v650, %v649
    %v661 = vpack.c.b16 %v652, %v651
    %v662 = vpack.c.b16 %v654, %v653
    %671 = vmatpush.bf16.msra.mxu0 %v662
    %672 = vmatpush.bf16.msra.mxu0 %v661
    %673 = vmatpush.bf16.msra.mxu0 %v660
    %674 = vmatpush.bf16.msra.mxu0 %v659
    %675 = vmatpush.bf16.msra.mxu0 %v658
    %676 = vmatpush.bf16.msra.mxu0 %v657
    %677 = vmatpush.bf16.msra.mxu0 %v656
    %678 = vmatpush.bf16.msra.mxu0 %v655
    %679 = vmatmul.bf16.gmra.mxu0 %v602
    %v680 = vpop.f32.mrf.mxu0
    %v681 = vadd.f32 %v621, %v680
    %v682 = vpop.f32.mrf.mxu0
    %683 = vdwg.mxu0
    %v684 = vmul.f32 %v681, 0.1
    %v685 = vmax.f32 %v681, %v684
    %v686 = vpack.c.bf16 %v685, %v685
    %v687 = vld [vmem:[#allocation9] sm:$0xf]
    %v688 = vld [vmem:[#allocation9 + $0x4] sm:$0xf]
    %v689 = vld [vmem:[#allocation9 + $0x8] sm:$0xf]
    %v690 = vld [vmem:[#allocation9 + $0xc] sm:$0xf]
    %v691 = vld [vmem:[#allocation9 + $0x10] sm:$0xf]
    %v692 = vld [vmem:[#allocation9 + $0x14] sm:$0xf]
    %v693 = vld [vmem:[#allocation9 + $0x18] sm:$0xf]
    %v694 = vld [vmem:[#allocation9 + $0x1c] sm:$0xf]
    %v695 = vld [vmem:[#allocation9 + $0x20] sm:$0xf]
    %v696 = vld [vmem:[#allocation9 + $0x24] sm:$0xf]
    %v697 = vld [vmem:[#allocation9 + $0x28] sm:$0xf]
    %v698 = vld [vmem:[#allocation9 + $0x2c] sm:$0xf]
    %v699 = vld [vmem:[#allocation9 + $0x30] sm:$0xf]
    %v700 = vld [vmem:[#allocation9 + $0x34] sm:$0xf]
    %v701 = vld [vmem:[#allocation9 + $0x38] sm:$0xf]
    %v702 = vld [vmem:[#allocation9 + $0x3c] sm:$0xf]
    %v703 = vld [vmem:[%s10] sm:$0x1]
    %v705 = vperm.slane %v703, 0
    %v723 = vunpack.c.l.b16 %v687
    %v724 = vunpack.c.l.b16 %v688
    %v725 = vunpack.c.l.b16 %v689
    %v726 = vunpack.c.l.b16 %v690
    %v727 = vunpack.c.l.b16 %v691
    %v728 = vunpack.c.l.b16 %v692
    %v729 = vunpack.c.l.b16 %v693
    %v730 = vunpack.c.l.b16 %v694
    %v731 = vunpack.c.l.b16 %v695
    %v732 = vunpack.c.l.b16 %v696
    %v733 = vunpack.c.l.b16 %v697
    %v734 = vunpack.c.l.b16 %v698
    %v735 = vunpack.c.l.b16 %v699
    %v736 = vunpack.c.l.b16 %v700
    %v737 = vunpack.c.l.b16 %v701
    %v738 = vunpack.c.l.b16 %v702
    %v739 = vpack.c.b16 %v724, %v723
    %v740 = vpack.c.b16 %v726, %v725
    %v741 = vpack.c.b16 %v728, %v727
    %v742 = vpack.c.b16 %v730, %v729
    %v743 = vpack.c.b16 %v732, %v731
    %v744 = vpack.c.b16 %v734, %v733
    %v745 = vpack.c.b16 %v736, %v735
    %v746 = vpack.c.b16 %v738, %v737
    %755 = vmatpush.bf16.msra.mxu0 %v746
    %756 = vmatpush.bf16.msra.mxu0 %v745
    %757 = vmatpush.bf16.msra.mxu0 %v744
    %758 = vmatpush.bf16.msra.mxu0 %v743
    %759 = vmatpush.bf16.msra.mxu0 %v742
    %760 = vmatpush.bf16.msra.mxu0 %v741
    %761 = vmatpush.bf16.msra.mxu0 %v740
    %762 = vmatpush.bf16.msra.mxu0 %v739
    %763 = vmatmul.bf16.gmra.mxu0 %v686
    %v764 = vpop.f32.mrf.mxu0
    %v765 = vadd.f32 %v705, %v764
    %v766 = vpop.f32.mrf.mxu0
    %767 = vdwg.mxu0
    %v768 = vlaneseq
    %v769 = vand.u32 %v768, 127
    %vm770 = vcmp.lt.s32.totalorder %v769, 64
    %v771 = vsel %vm770, 0.1, 1.0
    %v772 = vmul.f32 %v771, %v765
    %v773 = vmax.f32 %v765, %v772
    %774 = vst [vmem:[%s11] sm:$0xff] %v773
    // Predicated region
    $region66: #{bpw_mlp_forward.1} parent=1 // pred_check
      _
    $region67: #{bpw_mlp_forward.1} parent=1 // pred_check_branch
      %776 = sbr.rel (0) target = $region69
    $region68: #{bpw_mlp_forward.1} parent=1 // pred_region
      _
    $region69: #{bpw_mlp_forward.1} parent=1 // pred_fallthru
      _
    // Predicated region
    $region70: #{bpw_mlp_forward.1} parent=1 // pred_check
      _
    $region71: #{bpw_mlp_forward.1} parent=1 // pred_check_branch
      %778 = sbr.rel (0) target = $region73
    $region72: #{bpw_mlp_forward.1} parent=1 // pred_region
      _
    $region73: #{bpw_mlp_forward.1} parent=1 // pred_fallthru
      _
    %779 = vsyncpa [#allocation3], 1
    %780 = vsyncpa [#allocation5], 1
    %781 = vsyncpa [#allocation8], 1

</llo_original>
